<compile_context>
chip_gen: v5e
topology: v5e:2x2
jax: 0.10.0
libtpu: 0.0.40
codegen_flags: <defaults>
</compile_context>

<pallas_src>
import math

import jax
import jax.numpy as jnp
from jax.experimental import pallas as pl
from jax.experimental.pallas import tpu as pltpu


# ----------------------------------------------------------------------------
# Kernel: one (tile_s, N, E) slab of x plus the matching (tile_s, 1, E) PE rows.
# ----------------------------------------------------------------------------
def pos_enc_kernel(x_ref, pe_ref, o_ref):
    # Broadcast add over the batch dim (size-1 middle axis of pe) — pure VPU.
    o_ref[...] = x_ref[...] + pe_ref[...]


# ----------------------------------------------------------------------------
# PE table construction — identical math to the PyTorch module __init__.
# ----------------------------------------------------------------------------
def make_positional_encoding(max_len, d_model):
    position = jnp.arange(max_len, dtype=jnp.float32)[:, None]
    div_term = jnp.exp(jnp.arange(0, d_model, 2, dtype=jnp.float32)
                       * (-math.log(10000.0) / d_model))
    pe = jnp.zeros((max_len, d_model), jnp.float32)
    pe = pe.at[:, 0::2].set(jnp.sin(position * div_term))
    pe = pe.at[:, 1::2].set(jnp.cos(position * div_term))
    # unsqueeze(0).transpose(0, 1) in PyTorch -> (max_len, 1, d_model)
    return pe[:, None, :]


# ----------------------------------------------------------------------------
# Wrapper: pallas_call with sequence-tiled BlockSpecs.
# ----------------------------------------------------------------------------
def positional_encoding_forward(src, pe_table, *, max_tile_s=512):
    """src: (S, N, E) float32. Returns src + pe[:S] with shape (S, N, E)."""
    S, N, E = src.shape
    pe = pe_table[:S]                       # (S, 1, E)

    tile_s = min(S, max_tile_s)             # biggest tile that fits comfortably
    grid = (pl.cdiv(S, tile_s),)

    return pl.pallas_call(
        pos_enc_kernel,
        out_shape=jax.ShapeDtypeStruct((S, N, E), src.dtype),
        grid=grid,
        in_specs=[
            pl.BlockSpec((tile_s, N, E), lambda s: (s, 0, 0)),   # x slab
            pl.BlockSpec((tile_s, 1, E), lambda s: (s, 0, 0)),   # PE rows
        ],
        out_specs=pl.BlockSpec((tile_s, N, E), lambda s: (s, 0, 0)),
        compiler_params=pltpu.CompilerParams(
            dimension_semantics=("parallel",)),
    )(src, pe)


# ----------------------------------------------------------------------------
# Pure-JAX reference (same math as the PyTorch forward) for the check.
# ----------------------------------------------------------------------------
def reference_forward(src, pe_table):
    S = src.shape[0]
    return src + pe_table[:S]               # broadcast (S,1,E) over batch


if __name__ == "__main__":
    # Small shapes consistent with the module: d_model=128, max_len=128,
    # seq=8, batch=2 (PyTorch seq-first layout (S, N, E)).
    S, N, E, MAX_LEN = 8, 2, 128, 128

    key = jax.random.PRNGKey(0)
    src = jax.random.normal(key, (S, N, E), jnp.float32)

    pe_table = make_positional_encoding(MAX_LEN, E)

    out = jax.jit(positional_encoding_forward)(src, pe_table)
    out = jax.block_until_ready(out)
    assert out.shape == (S, N, E), out.shape

    ref = reference_forward(src, pe_table)
    err = float(jnp.abs(out - ref).max())
    assert jnp.allclose(out, ref, atol=1e-6, rtol=1e-6), err

    print("KERNEL_OK")
</pallas_src>

<mosaic_0001>
module attributes {stable_mosaic.version = 11 : i64} {
  func.func @pos_enc_kernel(%arg0: i32, %arg1: memref<8x2x128xf32, #tpu.memory_space<vmem>>, %arg2: memref<8x1x128xf32, #tpu.memory_space<vmem>>, %arg3: memref<8x2x128xf32, #tpu.memory_space<vmem>>) attributes {dimension_semantics = [#tpu.dimension_semantics<parallel>], iteration_bounds = array<i64: 1>, scalar_prefetch = 0 : i64, scratch_operands = 0 : i64, tpu.core_type = #tpu.core_type<tc>, window_params = [{transform_indices = @transform_0, window_bounds = array<i64: 8, 2, 128>}, {transform_indices = @transform_1, window_bounds = array<i64: 8, 1, 128>}, {transform_indices = @transform_2, window_bounds = array<i64: 8, 2, 128>}]} {
    %c0 = arith.constant 0 : index
    %c0_0 = arith.constant 0 : index
    %c0_1 = arith.constant 0 : index
    %0 = vector.load %arg1[%c0, %c0_0, %c0_1] : memref<8x2x128xf32, #tpu.memory_space<vmem>>, vector<8x2x128xf32>
    %c0_2 = arith.constant 0 : index
    %c0_3 = arith.constant 0 : index
    %c0_4 = arith.constant 0 : index
    %1 = vector.load %arg2[%c0_2, %c0_3, %c0_4] : memref<8x1x128xf32, #tpu.memory_space<vmem>>, vector<8x1x128xf32>
    %2 = vector.broadcast %1 : vector<8x1x128xf32> to vector<8x2x128xf32>
    %3 = arith.addf %0, %2 : vector<8x2x128xf32>
    %c0_5 = arith.constant 0 : index
    %c0_6 = arith.constant 0 : index
    %c0_7 = arith.constant 0 : index
    %4 = vector.load %arg3[%c0_5, %c0_6, %c0_7] : memref<8x2x128xf32, #tpu.memory_space<vmem>>, vector<8x2x128xf32>
    tpu.vector_store %arg3[%c0_5, %c0_6, %c0_7], %3 {strides = array<i32>} : memref<8x2x128xf32, #tpu.memory_space<vmem>>, vector<8x2x128xf32>,
    return
  }
  func.func @transform_0(%arg0: i32) -> (i32, i32, i32) {
    %c0_i32 = arith.constant 0 : i32
    %c0_i32_0 = arith.constant 0 : i32
    %c0_i32_1 = arith.constant 0 : i32
    return %arg0, %c0_i32, %c0_i32_0 : i32, i32, i32
  }
  func.func @transform_1(%arg0: i32) -> (i32, i32, i32) {
    %c0_i32 = arith.constant 0 : i32
    %c0_i32_0 = arith.constant 0 : i32
    %c0_i32_1 = arith.constant 0 : i32
    return %arg0, %c0_i32, %c0_i32_0 : i32, i32, i32
  }
  func.func @transform_2(%arg0: i32) -> (i32, i32, i32) {
    %c0_i32 = arith.constant 0 : i32
    %c0_i32_0 = arith.constant 0 : i32
    %c0_i32_1 = arith.constant 0 : i32
    return %arg0, %c0_i32, %c0_i32_0 : i32, i32, i32
  }
}

</mosaic_0001>

<llo_original>
// kernel: positional_encoding_forward.1
$region0: #{positional_encoding_forward.1}
  #allocation0 [shape = 'u32[]', space=smem, size = 0x4, offset = 0x4, fixed_abs, tag = 'smem constant byte address 0x4 - core index']
  #allocation1 [shape = 'u32[72,128]{1,0:T(1,128)}', space=vmem, size = 0x9000, scoped, tag = 'internal scratch']
  %s0 = inlined_call_operand.hbm [shape: f32[8,2,128], index: 0, kind: input, shape index: {}]
  %s1 = inlined_call_operand.vmem [shape: f32[8,1,128], index: 1, kind: input, shape index: {}]
  %s2 = inlined_call_operand.hbm [shape: f32[8,2,128], index: 2, kind: output, shape index: {}]
  %s3 = sld [smem:[#allocation0]]
  $region22: #{positional_encoding_forward.1} parent=0
    _
  %s5 = ssub.s32 1, %s3
  %s6 = scalar_select 0, %s5, %s3
  $region1: #{positional_encoding_forward.1} parent=0
    #allocation2 [shape = 'u8[8192]{0}', space=vmem, size = 0x2000, scoped, tag = 'input window, operand 0, single buffered']
    #allocation3 [shape = 's32[1]{0}', space=sflag, size = 0x4, scoped, tag = 'scoped memory for positional_encoding_forward.1']
    #allocation4 [shape = 's32[1]{0}', space=sflag, size = 0x4, scoped, tag = 'scoped memory for positional_encoding_forward.1']
    #allocation5 [shape = 'u8[8192]{0}', space=vmem, size = 0x2000, scoped, tag = 'output window, operand 0, single buffered']
    %7 = vsyncpa [#allocation3], 0
    %8 = vsyncpa [#allocation4], 0
    // Predicated region
    $region2: #{positional_encoding_forward.1} parent=1 // pred_check
      _
    $region3: #{positional_encoding_forward.1} parent=1 // pred_check_branch
      %10 = sbr.rel (0) target = $region5
    $region4: #{positional_encoding_forward.1} parent=1 // pred_region
      %12 = vsyncadd [#allocation3], 0
      %s13 = sshll.u32 %s0, 4
      %s14 = int_to_ptr.hbm [resolvable:$true] %s13
      %s15 = sshll.u32 [#allocation2], 4
      %s16 = int_to_ptr.vmem [resolvable:$true] %s15
      %21 = dma.hbm_to_vmem [thread:$0]  %s14, 256, %s16, [#allocation3], 32, 32, 2
    $region5: #{positional_encoding_forward.1} parent=1 // pred_fallthru
      _
    // Predicated region
    $region6: #{positional_encoding_forward.1} parent=1 // pred_check
      _
    $region7: #{positional_encoding_forward.1} parent=1 // pred_check_branch
      %23 = sbr.rel (0) target = $region9
    $region8: #{positional_encoding_forward.1} parent=1 // pred_region
      _
    $region9: #{positional_encoding_forward.1} parent=1 // pred_fallthru
      _
    // Predicated region
    $region10: #{positional_encoding_forward.1} parent=1 // pred_check
      _
    $region11: #{positional_encoding_forward.1} parent=1 // pred_check_branch
      %25 = sbr.rel (0) target = $region13
    $region12: #{positional_encoding_forward.1} parent=1 // pred_region
      %27 = dma.done [#allocation3], 256
    $region13: #{positional_encoding_forward.1} parent=1 // pred_fallthru
      _
    %v28 = vld [vmem:[#allocation2] sm:$0x3]
    %v29 = vld [vmem:[#allocation2 + $0x2] sm:$0x3]
    %v30 = vld [vmem:[#allocation2 + $0x4] sm:$0x3]
    %v31 = vld [vmem:[#allocation2 + $0x6] sm:$0x3]
    %v32 = vld [vmem:[#allocation2 + $0x8] sm:$0x3]
    %v33 = vld [vmem:[#allocation2 + $0xa] sm:$0x3]
    %v34 = vld [vmem:[#allocation2 + $0xc] sm:$0x3]
    %v35 = vld [vmem:[#allocation2 + $0xe] sm:$0x3]
    %v36 = vld [vmem:[%s1] sm:$0x1]
    %v37 = vld [vmem:[%s1 + $0x1] sm:$0x1]
    %v38 = vld [vmem:[%s1 + $0x2] sm:$0x1]
    %v39 = vld [vmem:[%s1 + $0x3] sm:$0x1]
    %v40 = vld [vmem:[%s1 + $0x4] sm:$0x1]
    %v41 = vld [vmem:[%s1 + $0x5] sm:$0x1]
    %v42 = vld [vmem:[%s1 + $0x6] sm:$0x1]
    %v43 = vld [vmem:[%s1 + $0x7] sm:$0x1]
    %v52 = vperm.slane %v36, 0
    %v53 = vperm.slane %v37, 0
    %v54 = vperm.slane %v38, 0
    %v55 = vperm.slane %v39, 0
    %v56 = vperm.slane %v40, 0
    %v57 = vperm.slane %v41, 0
    %v58 = vperm.slane %v42, 0
    %v59 = vperm.slane %v43, 0
    %v68 = vadd.f32 %v28, %v52
    %v69 = vadd.f32 %v29, %v53
    %v70 = vadd.f32 %v30, %v54
    %v71 = vadd.f32 %v31, %v55
    %v72 = vadd.f32 %v32, %v56
    %v73 = vadd.f32 %v33, %v57
    %v74 = vadd.f32 %v34, %v58
    %v75 = vadd.f32 %v35, %v59
    %76 = vst [vmem:[#allocation5] sm:$0x3] %v68
    %77 = vst [vmem:[#allocation5 + $0x2] sm:$0x3] %v69
    %78 = vst [vmem:[#allocation5 + $0x4] sm:$0x3] %v70
    %79 = vst [vmem:[#allocation5 + $0x6] sm:$0x3] %v71
    %80 = vst [vmem:[#allocation5 + $0x8] sm:$0x3] %v72
    %81 = vst [vmem:[#allocation5 + $0xa] sm:$0x3] %v73
    %82 = vst [vmem:[#allocation5 + $0xc] sm:$0x3] %v74
    %83 = vst [vmem:[#allocation5 + $0xe] sm:$0x3] %v75
    // Predicated region
    $region14: #{positional_encoding_forward.1} parent=1 // pred_check
      _
    $region15: #{positional_encoding_forward.1} parent=1 // pred_check_branch
      %85 = sbr.rel (0) target = $region17
    $region16: #{positional_encoding_forward.1} parent=1 // pred_region
      %87 = vsyncadd [#allocation4], 0
      %s88 = sshll.u32 [#allocation5], 4
      %s89 = int_to_ptr.vmem [resolvable:$true] %s88
      %s90 = sshll.u32 %s2, 4
      %s91 = int_to_ptr.hbm [resolvable:$true] %s90
      %96 = dma.vmem_to_hbm [thread:$0]  %s89, 256, %s91, [#allocation4], 32, 32, 2
    $region17: #{positional_encoding_forward.1} parent=1 // pred_fallthru
      _
    // Predicated region
    $region18: #{positional_encoding_forward.1} parent=1 // pred_check
      _
    $region19: #{positional_encoding_forward.1} parent=1 // pred_check_branch
      %98 = sbr.rel (0) target = $region21
    $region20: #{positional_encoding_forward.1} parent=1 // pred_region
      %100 = dma.done [#allocation4], 256
    $region21: #{positional_encoding_forward.1} parent=1 // pred_fallthru
      _
    %101 = vsyncpa [#allocation3], 1
    %102 = vsyncpa [#allocation4], 1

</llo_original>
